<compile_context>
chip_gen: v5e
topology: v5e:2x2
jax: 0.10.0
libtpu: 0.0.40
codegen_flags: <defaults>
</compile_context>

<pallas_src>
import functools

import jax
import jax.numpy as jnp
from jax.experimental import pallas as pl
from jax.experimental.pallas import tpu as pltpu


def _round_up(x, m):
    return ((x + m - 1) // m) * m


def _vae_params_kernel(x_ref, w_ref, b_ref, out_ref):
    # One fused MXU matmul per batch tile: (tile_b, E) @ (E, 2L) -> (tile_b, 2L)
    # with f32 accumulation; bias added on the f32 accumulator, single store.
    acc = jnp.dot(x_ref[...], w_ref[...], preferred_element_type=jnp.float32)
    out_ref[...] = (acc + b_ref[...]).astype(out_ref.dtype)


@functools.partial(jax.jit, static_argnames=("block_b", "compute_dtype"))
def vae_parameters_forward(x, w_mu, b_mu, w_lv, b_lv, *, block_b=512,
                           compute_dtype=None):
    """Returns (x @ w_mu + b_mu, x @ w_lv + b_lv) via one fused Pallas kernel.

    Weights are stored (embed_dim, latent_dim) (transposed w.r.t. nn.Linear)
    so the kernel computes y = x @ W + b directly on the MXU.  Any number of
    leading dims on x is supported (flattened internally, like nn.Linear).
    """
    orig_shape = x.shape
    E = orig_shape[-1]
    x2 = x.reshape(-1, E)
    B = x2.shape[0]
    L = w_mu.shape[1]
    out_dtype = x.dtype

    # ---- Fuse the two heads so the output is lane-dense (2L = 128 by default).
    w_cat = jnp.concatenate([w_mu, w_lv], axis=1)                      # (E, 2L)
    b_cat = jnp.concatenate(
        [b_mu.reshape(1, L), b_lv.reshape(1, L)], axis=1
    ).astype(jnp.float32)                                              # (1, 2L) f32
    N = 2 * L
    Np = _round_up(N, 128)          # keep stores unmasked even for odd latent_dim
    if Np != N:
        w_cat = jnp.pad(w_cat, ((0, 0), (0, Np - N)))
        b_cat = jnp.pad(b_cat, ((0, 0), (0, Np - N)))

    # ---- Optional low-precision streaming (memory-bound path); acc stays f32.
    if compute_dtype is not None:
        x_c = x2.astype(compute_dtype)
        w_cat = w_cat.astype(compute_dtype)
    else:
        x_c = x2

    # ---- Batch tiling: big tiles (mem-bound kernel), ragged batch zero-padded.
    tile_b = _round_up(min(block_b, _round_up(B, 8)), 8)
    Bp = _round_up(B, tile_b)
    if Bp != B:
        x_c = jnp.pad(x_c, ((0, Bp - B), (0, 0)))
    grid = (Bp // tile_b,)

    out = pl.pallas_call(
        _vae_params_kernel,
        out_shape=jax.ShapeDtypeStruct((Bp, Np), out_dtype),
        grid_spec=pl.GridSpec(
            grid=grid,
            in_specs=[
                pl.BlockSpec((tile_b, E), lambda i: (i, 0)),   # x tile (streamed)
                pl.BlockSpec((E, Np), lambda i: (0, 0)),       # fused weight (resident)
                pl.BlockSpec((1, Np), lambda i: (0, 0)),       # fused bias (f32, resident)
            ],
            out_specs=pl.BlockSpec((tile_b, Np), lambda i: (i, 0)),
        ),
        compiler_params=pltpu.CompilerParams(
            # Batch axis is independent -> shards across TensorCores on v7x.
            dimension_semantics=("parallel",),
        ),
    )(x_c, w_cat, b_cat)

    out = out[:B, :N]
    mu = out[:, :L].reshape(*orig_shape[:-1], L)
    logvar = out[:, L:].reshape(*orig_shape[:-1], L)
    return mu, logvar


def _init_linear_params(key, in_features, out_features, dtype=jnp.float32):
    # Deterministic init mimicking nn.Linear's default U(-1/sqrt(in), 1/sqrt(in)).
    kw, kb = jax.random.split(key)
    bound = 1.0 / jnp.sqrt(jnp.asarray(in_features, dtype))
    # Stored as (in, out) so the kernel computes x @ W.
    w = jax.random.uniform(kw, (in_features, out_features), dtype,
                           minval=-bound, maxval=bound)
    b = jax.random.uniform(kb, (out_features,), dtype,
                           minval=-bound, maxval=bound)
    return w, b


if __name__ == "__main__":
    embed_dim = 256   # module defaults
    latent_dim = 64
    batch = 8         # small demo batch

    key = jax.random.PRNGKey(0)
    kx, kmu, klv = jax.random.split(key, 3)

    x = jax.random.normal(kx, (batch, embed_dim), jnp.float32)
    w_mu, b_mu = _init_linear_params(kmu, embed_dim, latent_dim)
    w_lv, b_lv = _init_linear_params(klv, embed_dim, latent_dim)

    # Pure-JAX reference.
    mu_ref = x @ w_mu + b_mu
    lv_ref = x @ w_lv + b_lv

    # f32 path (tight check).
    mu, logvar = vae_parameters_forward(x, w_mu, b_mu, w_lv, b_lv)
    jax.block_until_ready((mu, logvar))
    assert mu.shape == (batch, latent_dim) and logvar.shape == (batch, latent_dim)
    assert jnp.allclose(mu, mu_ref, atol=1e-5), "mu mismatch (f32)"
    assert jnp.allclose(logvar, lv_ref, atol=1e-5), "logvar mismatch (f32)"

    # Ragged batch path (exercises padding, no divisibility assert).
    xr = x[:5]
    mu_r, lv_r = vae_parameters_forward(xr, w_mu, b_mu, w_lv, b_lv)
    jax.block_until_ready((mu_r, lv_r))
    assert jnp.allclose(mu_r, xr @ w_mu + b_mu, atol=1e-5), "mu mismatch (ragged)"
    assert jnp.allclose(lv_r, xr @ w_lv + b_lv, atol=1e-5), "logvar mismatch (ragged)"

    # Leading-dims path (nn.Linear accepts (..., E)).
    x3 = x.reshape(2, 4, embed_dim)
    mu3, lv3 = vae_parameters_forward(x3, w_mu, b_mu, w_lv, b_lv)
    jax.block_until_ready((mu3, lv3))
    assert mu3.shape == (2, 4, latent_dim) and lv3.shape == (2, 4, latent_dim)
    assert jnp.allclose(mu3.reshape(batch, latent_dim), mu_ref, atol=1e-5), \
        "mu mismatch (3-D input)"
    assert jnp.allclose(lv3.reshape(batch, latent_dim), lv_ref, atol=1e-5), \
        "logvar mismatch (3-D input)"

    # bf16 streaming path (memory-bound optimization; f32 accumulation).
    mu_b, lv_b = vae_parameters_forward(x, w_mu, b_mu, w_lv, b_lv,
                                        compute_dtype=jnp.bfloat16)
    jax.block_until_ready((mu_b, lv_b))
    assert jnp.allclose(mu_b, mu_ref, atol=5e-2, rtol=5e-2), "mu mismatch (bf16)"
    assert jnp.allclose(lv_b, lv_ref, atol=5e-2, rtol=5e-2), "logvar mismatch (bf16)"

    print("KERNEL_OK")
</pallas_src>

<mosaic_0001>
module attributes {stable_mosaic.version = 11 : i64} {
  func.func @_vae_params_kernel(%arg0: i32, %arg1: memref<8x256xf32, #tpu.memory_space<vmem>>, %arg2: memref<256x128xf32, #tpu.memory_space<vmem>>, %arg3: memref<1x128xf32, #tpu.memory_space<vmem>>, %arg4: memref<8x128xf32, #tpu.memory_space<vmem>>) attributes {dimension_semantics = [#tpu.dimension_semantics<parallel>], iteration_bounds = array<i64: 1>, scalar_prefetch = 0 : i64, scratch_operands = 0 : i64, tpu.core_type = #tpu.core_type<tc>, window_params = [{transform_indices = @transform_0, window_bounds = array<i64: 8, 256>}, {pipeline_mode = #tpu.pipeline_mode<synchronous>, transform_indices = @transform_1, window_bounds = array<i64: 256, 128>}, {pipeline_mode = #tpu.pipeline_mode<synchronous>, transform_indices = @transform_2, window_bounds = array<i64: 1, 128>}, {transform_indices = @transform_3, window_bounds = array<i64: 8, 128>}]} {
    %c0 = arith.constant 0 : index
    %c0_0 = arith.constant 0 : index
    %0 = vector.load %arg1[%c0, %c0_0] : memref<8x256xf32, #tpu.memory_space<vmem>>, vector<8x256xf32>
    %c0_1 = arith.constant 0 : index
    %c0_2 = arith.constant 0 : index
    %1 = vector.load %arg2[%c0_1, %c0_2] : memref<256x128xf32, #tpu.memory_space<vmem>>, vector<256x128xf32>
    %cst = arith.constant dense<0.000000e+00> : vector<8x128xf32>
    %2 = tpu.matmul %0, %1, %cst {dimension_numbers = #tpu.dot_dimension_numbers<[1], [0], [0], [1], [0, 0, 1, 1], [], []>} : vector<8x256xf32>, vector<256x128xf32>, vector<8x128xf32> -> vector<8x128xf32>
    %c0_3 = arith.constant 0 : index
    %c0_4 = arith.constant 0 : index
    %3 = vector.load %arg3[%c0_3, %c0_4] : memref<1x128xf32, #tpu.memory_space<vmem>>, vector<1x128xf32>
    %4 = vector.broadcast %3 : vector<1x128xf32> to vector<8x128xf32>
    %5 = arith.addf %2, %4 : vector<8x128xf32>
    %c0_5 = arith.constant 0 : index
    %c0_6 = arith.constant 0 : index
    %6 = vector.load %arg4[%c0_5, %c0_6] : memref<8x128xf32, #tpu.memory_space<vmem>>, vector<8x128xf32>
    tpu.vector_store %arg4[%c0_5, %c0_6], %5 {strides = array<i32>} : memref<8x128xf32, #tpu.memory_space<vmem>>, vector<8x128xf32>,
    return
  }
  func.func @transform_0(%arg0: i32) -> (i32, i32) {
    %c0_i32 = arith.constant 0 : i32
    %c0_i32_0 = arith.constant 0 : i32
    return %arg0, %c0_i32 : i32, i32
  }
  func.func @transform_1(%arg0: i32) -> (i32, i32) {
    %c0_i32 = arith.constant 0 : i32
    %c0_i32_0 = arith.constant 0 : i32
    %c0_i32_1 = arith.constant 0 : i32
    return %c0_i32, %c0_i32_0 : i32, i32
  }
  func.func @transform_2(%arg0: i32) -> (i32, i32) {
    %c0_i32 = arith.constant 0 : i32
    %c0_i32_0 = arith.constant 0 : i32
    %c0_i32_1 = arith.constant 0 : i32
    return %c0_i32, %c0_i32_0 : i32, i32
  }
  func.func @transform_3(%arg0: i32) -> (i32, i32) {
    %c0_i32 = arith.constant 0 : i32
    %c0_i32_0 = arith.constant 0 : i32
    return %arg0, %c0_i32 : i32, i32
  }
}

</mosaic_0001>

<llo_original>
// kernel: vae_parameters_forward.1
$region0: #{vae_parameters_forward.1}
  #allocation0 [shape = 'u32[]', space=smem, size = 0x4, offset = 0x4, fixed_abs, tag = 'smem constant byte address 0x4 - core index']
  #allocation1 [shape = 'u32[72,128]{1,0:T(1,128)}', space=vmem, size = 0x9000, scoped, tag = 'internal scratch']
  %s0 = inlined_call_operand.vmem [shape: f32[8,256], index: 0, kind: input, shape index: {}]
  %s1 = inlined_call_operand.vmem [shape: f32[256,128], index: 1, kind: input, shape index: {}]
  %s2 = inlined_call_operand.vmem [shape: f32[1,128], index: 2, kind: input, shape index: {}]
  %s3 = inlined_call_operand.vmem [shape: f32[8,128], index: 3, kind: output, shape index: {}]
  %s4 = sld [smem:[#allocation0]]
  $region22: #{vae_parameters_forward.1} parent=0
    _
  %s6 = ssub.s32 1, %s4
  %s7 = scalar_select 0, %s6, %s4
  // Predicated region
  $region2: #{vae_parameters_forward.1} parent=0 // pred_check
    _
  $region3: #{vae_parameters_forward.1} parent=0 // pred_check_branch
    %9 = sbr.rel (0) target = $region5
  $region4: #{vae_parameters_forward.1} parent=0 // pred_region
    _
  $region5: #{vae_parameters_forward.1} parent=0 // pred_fallthru
    _
  // Predicated region
  $region6: #{vae_parameters_forward.1} parent=0 // pred_check
    _
  $region7: #{vae_parameters_forward.1} parent=0 // pred_check_branch
    %11 = sbr.rel (0) target = $region9
  $region8: #{vae_parameters_forward.1} parent=0 // pred_region
    _
  $region9: #{vae_parameters_forward.1} parent=0 // pred_fallthru
    _
  // Predicated region
  $region10: #{vae_parameters_forward.1} parent=0 // pred_check
    _
  $region11: #{vae_parameters_forward.1} parent=0 // pred_check_branch
    %13 = sbr.rel (0) target = $region13
  $region12: #{vae_parameters_forward.1} parent=0 // pred_region
    _
  $region13: #{vae_parameters_forward.1} parent=0 // pred_fallthru
    _
  %v14 = vld [vmem:[%s0] sm:$0xff]
  %v15 = vld [vmem:[%s0 + $0x8] sm:$0xff]
  %v16 = vld [vmem:[%s1] sm:$0xff]
  %v17 = vld [vmem:[%s1 + $0x8] sm:$0xff]
  %v18 = vld [vmem:[%s1 + $0x10] sm:$0xff]
  %v19 = vld [vmem:[%s1 + $0x18] sm:$0xff]
  %v20 = vld [vmem:[%s1 + $0x20] sm:$0xff]
  %v21 = vld [vmem:[%s1 + $0x28] sm:$0xff]
  %v22 = vld [vmem:[%s1 + $0x30] sm:$0xff]
  %v23 = vld [vmem:[%s1 + $0x38] sm:$0xff]
  %v24 = vld [vmem:[%s1 + $0x40] sm:$0xff]
  %v25 = vld [vmem:[%s1 + $0x48] sm:$0xff]
  %v26 = vld [vmem:[%s1 + $0x50] sm:$0xff]
  %v27 = vld [vmem:[%s1 + $0x58] sm:$0xff]
  %v28 = vld [vmem:[%s1 + $0x60] sm:$0xff]
  %v29 = vld [vmem:[%s1 + $0x68] sm:$0xff]
  %v30 = vld [vmem:[%s1 + $0x70] sm:$0xff]
  %v31 = vld [vmem:[%s1 + $0x78] sm:$0xff]
  %v32 = vld [vmem:[%s1 + $0x80] sm:$0xff]
  %v33 = vld [vmem:[%s1 + $0x88] sm:$0xff]
  %v34 = vld [vmem:[%s1 + $0x90] sm:$0xff]
  %v35 = vld [vmem:[%s1 + $0x98] sm:$0xff]
  %v36 = vld [vmem:[%s1 + $0xa0] sm:$0xff]
  %v37 = vld [vmem:[%s1 + $0xa8] sm:$0xff]
  %v38 = vld [vmem:[%s1 + $0xb0] sm:$0xff]
  %v39 = vld [vmem:[%s1 + $0xb8] sm:$0xff]
  %v40 = vld [vmem:[%s1 + $0xc0] sm:$0xff]
  %v41 = vld [vmem:[%s1 + $0xc8] sm:$0xff]
  %v42 = vld [vmem:[%s1 + $0xd0] sm:$0xff]
  %v43 = vld [vmem:[%s1 + $0xd8] sm:$0xff]
  %v44 = vld [vmem:[%s1 + $0xe0] sm:$0xff]
  %v45 = vld [vmem:[%s1 + $0xe8] sm:$0xff]
  %v46 = vld [vmem:[%s1 + $0xf0] sm:$0xff]
  %v47 = vld [vmem:[%s1 + $0xf8] sm:$0xff]
  %v48 = vld [vmem:[%s2] sm:$0x1]
  %v50 = vperm.slane %v48, 0
  %52 = vmatpush.msra.mxu0 %v31
  %53 = vmatpush.msra.mxu0 %v30
  %54 = vmatpush.msra.mxu0 %v29
  %55 = vmatpush.msra.mxu0 %v28
  %56 = vmatpush.msra.mxu0 %v27
  %57 = vmatpush.msra.mxu0 %v26
  %58 = vmatpush.msra.mxu0 %v25
  %59 = vmatpush.msra.mxu0 %v24
  %60 = vmatpush.msra.mxu0 %v23
  %61 = vmatpush.msra.mxu0 %v22
  %62 = vmatpush.msra.mxu0 %v21
  %63 = vmatpush.msra.mxu0 %v20
  %64 = vmatpush.msra.mxu0 %v19
  %65 = vmatpush.msra.mxu0 %v18
  %66 = vmatpush.msra.mxu0 %v17
  %67 = vmatpush.msra.mxu0 %v16
  %68 = vmatmul.f32.gmra.mxu0 %v14
  %v69 = vpop.f32.mrf.mxu0
  %v70 = vadd.f32 %v50, %v69
  %71 = vdwg.mxu0
  %72 = vmatpush.msra.mxu0 %v47
  %73 = vmatpush.msra.mxu0 %v46
  %74 = vmatpush.msra.mxu0 %v45
  %75 = vmatpush.msra.mxu0 %v44
  %76 = vmatpush.msra.mxu0 %v43
  %77 = vmatpush.msra.mxu0 %v42
  %78 = vmatpush.msra.mxu0 %v41
  %79 = vmatpush.msra.mxu0 %v40
  %80 = vmatpush.msra.mxu0 %v39
  %81 = vmatpush.msra.mxu0 %v38
  %82 = vmatpush.msra.mxu0 %v37
  %83 = vmatpush.msra.mxu0 %v36
  %84 = vmatpush.msra.mxu0 %v35
  %85 = vmatpush.msra.mxu0 %v34
  %86 = vmatpush.msra.mxu0 %v33
  %87 = vmatpush.msra.mxu0 %v32
  %88 = vmatmul.f32.gmra.mxu0 %v15
  %v89 = vpop.f32.mrf.mxu0
  %v90 = vadd.f32 %v70, %v89
  %91 = vdwg.mxu0
  %92 = vst [vmem:[%s3] sm:$0xff] %v90
  // Predicated region
  $region14: #{vae_parameters_forward.1} parent=0 // pred_check
    _
  $region15: #{vae_parameters_forward.1} parent=0 // pred_check_branch
    %94 = sbr.rel (0) target = $region17
  $region16: #{vae_parameters_forward.1} parent=0 // pred_region
    _
  $region17: #{vae_parameters_forward.1} parent=0 // pred_fallthru
    _
  // Predicated region
  $region18: #{vae_parameters_forward.1} parent=0 // pred_check
    _
  $region19: #{vae_parameters_forward.1} parent=0 // pred_check_branch
    %96 = sbr.rel (0) target = $region21
  $region20: #{vae_parameters_forward.1} parent=0 // pred_region
    _
  $region21: #{vae_parameters_forward.1} parent=0 // pred_fallthru
    _

</llo_original>
